<compile_context>
chip_gen: v7x
topology: tpu7x:2x2x1
jax: 0.10.0
libtpu: 0.0.40
codegen_flags: <defaults>
</compile_context>

<pallas_src>
import functools

import jax
import jax.numpy as jnp
from jax.experimental import pallas as pl
from jax.experimental.pallas import tpu as pltpu


# ----------------------------------------------------------------------------
# Pallas kernel
# ----------------------------------------------------------------------------
def hard_simple_vfe_kernel(x_ref, recip_ref, out_ref, *, n_points, n_chan,
                           num_features):
    """x_ref:    (tm, n_points * n_chan) native dtype -- flattened point slots.
       recip_ref:(tm, 1) f32 -- 1 / num_points per voxel.
       out_ref:  (tm, num_features) f32 -- per-voxel mean."""
    x = x_ref[...].astype(jnp.float32)                # cast on load (no HBM copy)

    # Channel-wise sum over point slots.  Pairwise fold while the slot count is
    # even (exact f32, log2(N) lane-slices + adds per vreg); sequential fold for
    # any odd remainder.  All slice sizes are static.
    slots = n_points
    while slots > 1 and slots % 2 == 0:
        half = (slots // 2) * n_chan
        x = x[:, :half] + x[:, half:]
        slots //= 2
    acc = x[:, :n_chan]
    for k in range(1, slots):
        acc = acc + x[:, k * n_chan:(k + 1) * n_chan]

    # Mean = sum * (1/num_points); broadcast of (tm,1) over F lanes is cheap.
    out_ref[...] = acc[:, :num_features] * recip_ref[...]


# ----------------------------------------------------------------------------
# Wrapper
# ----------------------------------------------------------------------------
@functools.partial(jax.jit, static_argnames=("num_features", "tm"))
def hard_simple_vfe_forward(features, num_points, coors, *, num_features=4,
                            tm=4096):
    """features: (M, N, C) point features per voxel (padded slots are zero, as
    produced by hard voxelization).  num_points: (M,).  coors: unused."""
    del coors  # HardSimpleVFE does not use voxel coordinates.
    M, N, C = features.shape
    F = num_features
    assert F <= C

    # Flatten point slots onto lanes: free contiguous reshape, contiguous DMA.
    # Keep the native dtype; the kernel upcasts after the load.
    x = features.reshape(M, N * C)
    # Tiny (M,1) op; turns the in-kernel divide into a multiply.  No clamp, so
    # semantics match the PyTorch module exactly (num_points >= 1 in practice).
    recip = (1.0 / num_points.astype(jnp.float32)).reshape(M, 1)

    # Tile: full array if it fits in one block, else tm rows per step.  tm is a
    # multiple of 16 (bf16 sublane tiling); the ragged last block is clipped by
    # Pallas (grid = cdiv), so no wrapper-side padding pass is needed.
    tm_eff = M if M <= tm else tm
    n_steps = pl.cdiv(M, tm_eff)

    kernel = functools.partial(hard_simple_vfe_kernel, n_points=N, n_chan=C,
                               num_features=F)

    out = pl.pallas_call(
        kernel,
        out_shape=jax.ShapeDtypeStruct((M, F), jnp.float32),
        grid_spec=pltpu.PrefetchScalarGridSpec(
            num_scalar_prefetch=0,
            grid=(n_steps,),
            in_specs=[
                pl.BlockSpec((tm_eff, N * C), lambda i: (i, 0)),
                pl.BlockSpec((tm_eff, 1), lambda i: (i, 0)),
            ],
            out_specs=pl.BlockSpec((tm_eff, F), lambda i: (i, 0)),
        ),
        compiler_params=pltpu.CompilerParams(
            dimension_semantics=("parallel",),
            vmem_limit_bytes=32 * 1024 * 1024),
    )(x, recip)

    return out


# ----------------------------------------------------------------------------
# Pure-JAX reference (same math as the PyTorch module)
# ----------------------------------------------------------------------------
def hard_simple_vfe_ref(features, num_points, num_features=4):
    s = jnp.sum(features[:, :, :num_features].astype(jnp.float32), axis=1)
    return s / num_points.astype(jnp.float32)[:, None]


# ----------------------------------------------------------------------------
if __name__ == "__main__":
    key = jax.random.PRNGKey(0)
    kf, kn = jax.random.split(key, 2)

    M, N, C = 100, 8, 4           # voxels, max points per voxel, point features
    num_points = jax.random.randint(kn, (M,), 1, N + 1, dtype=jnp.int32)
    features = jax.random.uniform(kf, (M, N, C), jnp.float32,
                                  minval=-2.0, maxval=2.0)
    # Hard voxelization zero-pads unfilled point slots; mirror that here.
    valid = (jnp.arange(N)[None, :] < num_points[:, None])[..., None]
    features = features * valid.astype(jnp.float32)

    coors = jnp.zeros((M, 4), jnp.int32)   # unused by HardSimpleVFE

    ref = hard_simple_vfe_ref(features, num_points, 4)

    # 1) Single full-extent block (M <= tm).
    out = hard_simple_vfe_forward(features, num_points, coors, num_features=4)
    out = jax.block_until_ready(out)
    assert out.shape == (M, 4), out.shape
    err = float(jnp.max(jnp.abs(out - ref)))
    assert jnp.allclose(out, ref, rtol=1e-5, atol=1e-5), f"max abs err {err}"

    # 2) Multi-step grid with a ragged last block (exercises the cdiv path).
    out2 = hard_simple_vfe_forward(features, num_points, coors,
                                   num_features=4, tm=32)
    out2 = jax.block_until_ready(out2)
    err2 = float(jnp.max(jnp.abs(out2 - ref)))
    assert jnp.allclose(out2, ref, rtol=1e-5, atol=1e-5), f"max abs err {err2}"

    print("KERNEL_OK")
</pallas_src>

<mosaic_0001>
module attributes {stable_mosaic.version = 11 : i64} {
  func.func @hard_simple_vfe_kernel(%arg0: i32, %arg1: memref<100x32xf32, #tpu.memory_space<vmem>>, %arg2: memref<100x1xf32, #tpu.memory_space<vmem>>, %arg3: memref<100x4xf32, #tpu.memory_space<vmem>>) attributes {dimension_semantics = [#tpu.dimension_semantics<parallel>], iteration_bounds = array<i64: 1>, scalar_prefetch = 0 : i64, scratch_operands = 0 : i64, tpu.core_type = #tpu.core_type<tc>, window_params = [{transform_indices = @transform_0, window_bounds = array<i64: 100, 32>}, {transform_indices = @transform_1, window_bounds = array<i64: 100, 1>}, {transform_indices = @transform_2, window_bounds = array<i64: 100, 4>}]} {
    %c0 = arith.constant 0 : index
    %c0_0 = arith.constant 0 : index
    %0 = vector.load %arg1[%c0, %c0_0] : memref<100x32xf32, #tpu.memory_space<vmem>>, vector<100x32xf32>
    %1 = vector.extract_strided_slice %0 {offsets = [0, 0], sizes = [100, 16], strides = [1, 1]} : vector<100x32xf32> to vector<100x16xf32>
    %2 = vector.extract_strided_slice %0 {offsets = [0, 16], sizes = [100, 16], strides = [1, 1]} : vector<100x32xf32> to vector<100x16xf32>
    %3 = arith.addf %1, %2 : vector<100x16xf32>
    %4 = vector.extract_strided_slice %3 {offsets = [0, 0], sizes = [100, 8], strides = [1, 1]} : vector<100x16xf32> to vector<100x8xf32>
    %5 = vector.extract_strided_slice %3 {offsets = [0, 8], sizes = [100, 8], strides = [1, 1]} : vector<100x16xf32> to vector<100x8xf32>
    %6 = arith.addf %4, %5 : vector<100x8xf32>
    %7 = vector.extract_strided_slice %6 {offsets = [0, 0], sizes = [100, 4], strides = [1, 1]} : vector<100x8xf32> to vector<100x4xf32>
    %8 = vector.extract_strided_slice %6 {offsets = [0, 4], sizes = [100, 4], strides = [1, 1]} : vector<100x8xf32> to vector<100x4xf32>
    %9 = arith.addf %7, %8 : vector<100x4xf32>
    %c0_1 = arith.constant 0 : index
    %c0_2 = arith.constant 0 : index
    %10 = vector.load %arg2[%c0_1, %c0_2] : memref<100x1xf32, #tpu.memory_space<vmem>>, vector<100x1xf32>
    %11 = vector.broadcast %10 : vector<100x1xf32> to vector<100x4xf32>
    %12 = arith.mulf %9, %11 : vector<100x4xf32>
    %c0_3 = arith.constant 0 : index
    %c0_4 = arith.constant 0 : index
    %13 = vector.load %arg3[%c0_3, %c0_4] : memref<100x4xf32, #tpu.memory_space<vmem>>, vector<100x4xf32>
    tpu.vector_store %arg3[%c0_3, %c0_4], %12 {strides = array<i32>} : memref<100x4xf32, #tpu.memory_space<vmem>>, vector<100x4xf32>,
    return
  }
  func.func @transform_0(%arg0: i32) -> (i32, i32) {
    %c0_i32 = arith.constant 0 : i32
    %c0_i32_0 = arith.constant 0 : i32
    return %arg0, %c0_i32 : i32, i32
  }
  func.func @transform_1(%arg0: i32) -> (i32, i32) {
    %c0_i32 = arith.constant 0 : i32
    %c0_i32_0 = arith.constant 0 : i32
    return %arg0, %c0_i32 : i32, i32
  }
  func.func @transform_2(%arg0: i32) -> (i32, i32) {
    %c0_i32 = arith.constant 0 : i32
    %c0_i32_0 = arith.constant 0 : i32
    return %arg0, %c0_i32 : i32, i32
  }
}

</mosaic_0001>

<llo_original>
// kernel: hard_simple_vfe_forward.1
$region0: #{hard_simple_vfe_forward.1}
  #allocation0 [shape = 'u32[]', space=smem, size = 0x4, offset = 0x4, fixed_abs, tag = 'smem constant byte address 0x4 - core index']
  #allocation1 [shape = 'u32[144,128]{1,0:T(1,128)}', space=vmem, size = 0x12000, scoped, tag = 'internal scratch']
  %s0 = inlined_call_operand.vmem [shape: f32[100,32], index: 0, kind: input, shape index: {}]
  %s1 = inlined_call_operand.vmem [shape: f32[100,1], index: 1, kind: input, shape index: {}]
  %s2 = inlined_call_operand.vmem [shape: f32[100,4], index: 2, kind: output, shape index: {}]
  %s3 = sld [smem:[#allocation0]]
  $region18: #{hard_simple_vfe_forward.1} parent=0
    _
  %s5 = ssub.s32 1, %s3
  %s6 = scalar_select 0, %s5, %s3
  // Predicated region
  $region2: #{hard_simple_vfe_forward.1} parent=0 // pred_check
    _
  $region3: #{hard_simple_vfe_forward.1} parent=0 // pred_check_branch
    %8 = sbr.rel (0) target = $region5
  $region4: #{hard_simple_vfe_forward.1} parent=0 // pred_region
    _
  $region5: #{hard_simple_vfe_forward.1} parent=0 // pred_fallthru
    _
  // Predicated region
  $region6: #{hard_simple_vfe_forward.1} parent=0 // pred_check
    _
  $region7: #{hard_simple_vfe_forward.1} parent=0 // pred_check_branch
    %10 = sbr.rel (0) target = $region9
  $region8: #{hard_simple_vfe_forward.1} parent=0 // pred_region
    _
  $region9: #{hard_simple_vfe_forward.1} parent=0 // pred_fallthru
    _
  %v11 = vld [vmem:[%s0] sm:$0xff]
  %v12 = vld [vmem:[%s0 + $0x8] sm:$0xff]
  %v13 = vld [vmem:[%s0 + $0x10] sm:$0xff]
  %v14 = vld [vmem:[%s0 + $0x18] sm:$0xff]
  %v15 = vld [vmem:[%s0 + $0x20] sm:$0xff]
  %v16 = vld [vmem:[%s0 + $0x28] sm:$0xff]
  %v17 = vld [vmem:[%s0 + $0x30] sm:$0xff]
  %v18 = vld [vmem:[%s0 + $0x38] sm:$0xff]
  %v19 = vld [vmem:[%s0 + $0x40] sm:$0xff]
  %v20 = vld [vmem:[%s0 + $0x48] sm:$0xff]
  %v21 = vld [vmem:[%s0 + $0x50] sm:$0xff]
  %v22 = vld [vmem:[%s0 + $0x58] sm:$0xff]
  %v23 = vld [vmem:[%s0 + $0x60] sm:$0xf]
  %37 = vrot.lane.b32.xlu0 %v11, 112
  %v38 = vpop.permute.xlu0 %37
  %39 = vrot.lane.b32.xlu0 %v12, 112
  %v40 = vpop.permute.xlu0 %39
  %41 = vrot.lane.b32.xlu0 %v13, 112
  %v42 = vpop.permute.xlu0 %41
  %43 = vrot.lane.b32.xlu0 %v14, 112
  %v44 = vpop.permute.xlu0 %43
  %45 = vrot.lane.b32.xlu0 %v15, 112
  %v46 = vpop.permute.xlu0 %45
  %47 = vrot.lane.b32.xlu0 %v16, 112
  %v48 = vpop.permute.xlu0 %47
  %49 = vrot.lane.b32.xlu0 %v17, 112
  %v50 = vpop.permute.xlu0 %49
  %51 = vrot.lane.b32.xlu0 %v18, 112
  %v52 = vpop.permute.xlu0 %51
  %53 = vrot.lane.b32.xlu0 %v19, 112
  %v54 = vpop.permute.xlu0 %53
  %55 = vrot.lane.b32.xlu0 %v20, 112
  %v56 = vpop.permute.xlu0 %55
  %57 = vrot.lane.b32.xlu0 %v21, 112
  %v58 = vpop.permute.xlu0 %57
  %59 = vrot.lane.b32.xlu0 %v22, 112
  %v60 = vpop.permute.xlu0 %59
  %61 = vrot.lane.b32.xlu0 %v23, 112
  %v62 = vpop.permute.xlu0 %61
  %v76 = vadd.f32 %v11, %v38
  %v77 = vadd.f32 %v12, %v40
  %v78 = vadd.f32 %v13, %v42
  %v79 = vadd.f32 %v14, %v44
  %v80 = vadd.f32 %v15, %v46
  %v81 = vadd.f32 %v16, %v48
  %v82 = vadd.f32 %v17, %v50
  %v83 = vadd.f32 %v18, %v52
  %v84 = vadd.f32 %v19, %v54
  %v85 = vadd.f32 %v20, %v56
  %v86 = vadd.f32 %v21, %v58
  %v87 = vadd.f32 %v22, %v60
  %v88 = vadd.f32 %v23, %v62
  %102 = vrot.lane.b32.xlu0 %v76, 120
  %v103 = vpop.permute.xlu0 %102
  %104 = vrot.lane.b32.xlu0 %v77, 120
  %v105 = vpop.permute.xlu0 %104
  %106 = vrot.lane.b32.xlu0 %v78, 120
  %v107 = vpop.permute.xlu0 %106
  %108 = vrot.lane.b32.xlu0 %v79, 120
  %v109 = vpop.permute.xlu0 %108
  %110 = vrot.lane.b32.xlu0 %v80, 120
  %v111 = vpop.permute.xlu0 %110
  %112 = vrot.lane.b32.xlu0 %v81, 120
  %v113 = vpop.permute.xlu0 %112
  %114 = vrot.lane.b32.xlu0 %v82, 120
  %v115 = vpop.permute.xlu0 %114
  %116 = vrot.lane.b32.xlu0 %v83, 120
  %v117 = vpop.permute.xlu0 %116
  %118 = vrot.lane.b32.xlu0 %v84, 120
  %v119 = vpop.permute.xlu0 %118
  %120 = vrot.lane.b32.xlu0 %v85, 120
  %v121 = vpop.permute.xlu0 %120
  %122 = vrot.lane.b32.xlu0 %v86, 120
  %v123 = vpop.permute.xlu0 %122
  %124 = vrot.lane.b32.xlu0 %v87, 120
  %v125 = vpop.permute.xlu0 %124
  %126 = vrot.lane.b32.xlu0 %v88, 120
  %v127 = vpop.permute.xlu0 %126
  %v141 = vadd.f32 %v76, %v103
  %v142 = vadd.f32 %v77, %v105
  %v143 = vadd.f32 %v78, %v107
  %v144 = vadd.f32 %v79, %v109
  %v145 = vadd.f32 %v80, %v111
  %v146 = vadd.f32 %v81, %v113
  %v147 = vadd.f32 %v82, %v115
  %v148 = vadd.f32 %v83, %v117
  %v149 = vadd.f32 %v84, %v119
  %v150 = vadd.f32 %v85, %v121
  %v151 = vadd.f32 %v86, %v123
  %v152 = vadd.f32 %v87, %v125
  %v153 = vadd.f32 %v88, %v127
  %167 = vrot.lane.b32.xlu0 %v141, 124
  %v168 = vpop.permute.xlu0 %167
  %169 = vrot.lane.b32.xlu0 %v142, 124
  %v170 = vpop.permute.xlu0 %169
  %171 = vrot.lane.b32.xlu0 %v143, 124
  %v172 = vpop.permute.xlu0 %171
  %173 = vrot.lane.b32.xlu0 %v144, 124
  %v174 = vpop.permute.xlu0 %173
  %175 = vrot.lane.b32.xlu0 %v145, 124
  %v176 = vpop.permute.xlu0 %175
  %177 = vrot.lane.b32.xlu0 %v146, 124
  %v178 = vpop.permute.xlu0 %177
  %179 = vrot.lane.b32.xlu0 %v147, 124
  %v180 = vpop.permute.xlu0 %179
  %181 = vrot.lane.b32.xlu0 %v148, 124
  %v182 = vpop.permute.xlu0 %181
  %183 = vrot.lane.b32.xlu0 %v149, 124
  %v184 = vpop.permute.xlu0 %183
  %185 = vrot.lane.b32.xlu0 %v150, 124
  %v186 = vpop.permute.xlu0 %185
  %187 = vrot.lane.b32.xlu0 %v151, 124
  %v188 = vpop.permute.xlu0 %187
  %189 = vrot.lane.b32.xlu0 %v152, 124
  %v190 = vpop.permute.xlu0 %189
  %191 = vrot.lane.b32.xlu0 %v153, 124
  %v192 = vpop.permute.xlu0 %191
  %v206 = vadd.f32 %v141, %v168
  %v207 = vadd.f32 %v142, %v170
  %v208 = vadd.f32 %v143, %v172
  %v209 = vadd.f32 %v144, %v174
  %v210 = vadd.f32 %v145, %v176
  %v211 = vadd.f32 %v146, %v178
  %v212 = vadd.f32 %v147, %v180
  %v213 = vadd.f32 %v148, %v182
  %v214 = vadd.f32 %v149, %v184
  %v215 = vadd.f32 %v150, %v186
  %v216 = vadd.f32 %v151, %v188
  %v217 = vadd.f32 %v152, %v190
  %v218 = vadd.f32 %v153, %v192
  %v219 = vld [vmem:[%s1] sm:$0xff]
  %v220 = vld [vmem:[%s1 + $0x8] sm:$0xff]
  %v221 = vld [vmem:[%s1 + $0x10] sm:$0xff]
  %v222 = vld [vmem:[%s1 + $0x18] sm:$0xff]
  %v223 = vld [vmem:[%s1 + $0x20] sm:$0xff]
  %v224 = vld [vmem:[%s1 + $0x28] sm:$0xff]
  %v225 = vld [vmem:[%s1 + $0x30] sm:$0xff]
  %v226 = vld [vmem:[%s1 + $0x38] sm:$0xff]
  %v227 = vld [vmem:[%s1 + $0x40] sm:$0xff]
  %v228 = vld [vmem:[%s1 + $0x48] sm:$0xff]
  %v229 = vld [vmem:[%s1 + $0x50] sm:$0xff]
  %v230 = vld [vmem:[%s1 + $0x58] sm:$0xff]
  %v231 = vld [vmem:[%s1 + $0x60] sm:$0xf]
  %233 = vset.pattern.permute.xlu0 0
  %234 = vperm.xlu0 %233, %v219
  %v235 = vpop.permute.xlu0 %234
  %238 = vset.pattern.permute.xlu0 0
  %239 = vperm.xlu0 %238, %v220
  %v240 = vpop.permute.xlu0 %239
  %243 = vset.pattern.permute.xlu0 0
  %244 = vperm.xlu0 %243, %v221
  %v245 = vpop.permute.xlu0 %244
  %248 = vset.pattern.permute.xlu0 0
  %249 = vperm.xlu0 %248, %v222
  %v250 = vpop.permute.xlu0 %249
  %253 = vset.pattern.permute.xlu0 0
  %254 = vperm.xlu0 %253, %v223
  %v255 = vpop.permute.xlu0 %254
  %258 = vset.pattern.permute.xlu0 0
  %259 = vperm.xlu0 %258, %v224
  %v260 = vpop.permute.xlu0 %259
  %263 = vset.pattern.permute.xlu0 0
  %264 = vperm.xlu0 %263, %v225
  %v265 = vpop.permute.xlu0 %264
  %268 = vset.pattern.permute.xlu0 0
  %269 = vperm.xlu0 %268, %v226
  %v270 = vpop.permute.xlu0 %269
  %273 = vset.pattern.permute.xlu0 0
  %274 = vperm.xlu0 %273, %v227
  %v275 = vpop.permute.xlu0 %274
  %278 = vset.pattern.permute.xlu0 0
  %279 = vperm.xlu0 %278, %v228
  %v280 = vpop.permute.xlu0 %279
  %283 = vset.pattern.permute.xlu0 0
  %284 = vperm.xlu0 %283, %v229
  %v285 = vpop.permute.xlu0 %284
  %288 = vset.pattern.permute.xlu0 0
  %289 = vperm.xlu0 %288, %v230
  %v290 = vpop.permute.xlu0 %289
  %293 = vset.pattern.permute.xlu0 0
  %294 = vperm.xlu0 %293, %v231
  %v295 = vpop.permute.xlu0 %294
  %v297 = vmul.f32 %v206, %v235
  %v298 = vmul.f32 %v207, %v240
  %v299 = vmul.f32 %v208, %v245
  %v300 = vmul.f32 %v209, %v250
  %v301 = vmul.f32 %v210, %v255
  %v302 = vmul.f32 %v211, %v260
  %v303 = vmul.f32 %v212, %v265
  %v304 = vmul.f32 %v213, %v270
  %v305 = vmul.f32 %v214, %v275
  %v306 = vmul.f32 %v215, %v280
  %v307 = vmul.f32 %v216, %v285
  %v308 = vmul.f32 %v217, %v290
  %v309 = vmul.f32 %v218, %v295
  %vm310 = vcmask 31744
  %311 = vst.msk [vmem:[%s2] sm:$0xff] %vm310, %v297
  %312 = vst.msk [vmem:[%s2 + $0x8] sm:$0xff] %vm310, %v298
  %313 = vst.msk [vmem:[%s2 + $0x10] sm:$0xff] %vm310, %v299
  %314 = vst.msk [vmem:[%s2 + $0x18] sm:$0xff] %vm310, %v300
  %315 = vst.msk [vmem:[%s2 + $0x20] sm:$0xff] %vm310, %v301
  %316 = vst.msk [vmem:[%s2 + $0x28] sm:$0xff] %vm310, %v302
  %317 = vst.msk [vmem:[%s2 + $0x30] sm:$0xff] %vm310, %v303
  %318 = vst.msk [vmem:[%s2 + $0x38] sm:$0xff] %vm310, %v304
  %319 = vst.msk [vmem:[%s2 + $0x40] sm:$0xff] %vm310, %v305
  %320 = vst.msk [vmem:[%s2 + $0x48] sm:$0xff] %vm310, %v306
  %321 = vst.msk [vmem:[%s2 + $0x50] sm:$0xff] %vm310, %v307
  %322 = vst.msk [vmem:[%s2 + $0x58] sm:$0xff] %vm310, %v308
  %vm323 = vcmask 27648
  %324 = vst.msk [vmem:[%s2 + $0x60] sm:$0xf] %vm323, %v309
  // Predicated region
  $region10: #{hard_simple_vfe_forward.1} parent=0 // pred_check
    _
  $region11: #{hard_simple_vfe_forward.1} parent=0 // pred_check_branch
    %326 = sbr.rel (0) target = $region13
  $region12: #{hard_simple_vfe_forward.1} parent=0 // pred_region
    _
  $region13: #{hard_simple_vfe_forward.1} parent=0 // pred_fallthru
    _
  // Predicated region
  $region14: #{hard_simple_vfe_forward.1} parent=0 // pred_check
    _
  $region15: #{hard_simple_vfe_forward.1} parent=0 // pred_check_branch
    %328 = sbr.rel (0) target = $region17
  $region16: #{hard_simple_vfe_forward.1} parent=0 // pred_region
    _
  $region17: #{hard_simple_vfe_forward.1} parent=0 // pred_fallthru
    _

</llo_original>
